<compile_context>
chip_gen: v7x
topology: tpu7x:2x2x1
jax: 0.10.0
libtpu: 0.0.40
codegen_flags: <defaults>
</compile_context>

<pallas_src>
import functools

import jax
import jax.numpy as jnp
import numpy as np
from jax.experimental import pallas as pl
from jax.experimental.pallas import tpu as pltpu

VOCAB_SIZE = 500
EMBED_DIM = 10
HIDDEN = 2
NGATES = 3 * HIDDEN          # PyTorch gate-row order: r0, r1, z0, z1, n0, n1
NGATES_PAD = 8               # gate axis padded to a full sublane tile
LANES = 128                  # batch tile width (lane axis)
MAX_SEQ_CHUNK = 128          # time steps per grid step (fully unrolled inside the kernel)


def _round_up(x, m):
    return (x + m - 1) // m * m


def _sigmoid(x):
    # Logistic via EUP tanh: avoids exp + full-precision divide on the serial h chain.
    return 0.5 * jnp.tanh(0.5 * x) + 0.5


def gru_kernel(gi_ref, hh_ref, wout_ref, bout_ref, o_ref, h_ref, *, seq_chunk):
    """Serial GRU recurrence + Linear(2->1) + Sigmoid; gates on sublanes, batch on lanes.

    gi_ref  : (seq_chunk, 8, BT)  VMEM  per-step gate slabs (input proj + folded biases;
                                         rows: r0,r1,z0,z1,n0,n1,pad,pad)
    hh_ref  : (3, 8, BT)     f32  VMEM  pre-broadcast constants:
                                         [0]=W_hh[:,0], [1]=W_hh[:,1], [2]=b_hn (rows 4:6)
    wout_ref: (2,)           f32  SMEM  Linear weight
    bout_ref: (1,)           f32  SMEM  Linear bias
    o_ref   : (1, BT)        f32  VMEM  sigmoid(logits) for this batch tile
    h_ref   : (2, BT)        f32  VMEM scratch, hidden state carried across seq chunks
    """
    s = pl.program_id(1)

    @pl.when(s == 0)
    def _init():
        # Zero-init (also zeroes padded batch lanes; stripped in the wrapper).
        h_ref[...] = jnp.zeros_like(h_ref)

    bt = h_ref.shape[1]

    # Hoisted constants: one full-tile load each, once per chunk, off the per-step chain.
    wc0 = hh_ref[0]            # (8, BT)
    wc1 = hh_ref[1]            # (8, BT)
    bn = hh_ref[2]             # (8, BT)  b_hn in rows 4:6, zero elsewhere

    h = h_ref[...]             # (2, BT): single load per chunk

    for i in range(seq_chunk):                                   # fully unrolled
        g = gi_ref[i].astype(jnp.float32)                        # (8, BT) gate slab
        h0 = jnp.broadcast_to(h[0:1, :], (NGATES_PAD, bt))       # sublane broadcast
        h1 = jnp.broadcast_to(h[1:2, :], (NGATES_PAD, bt))
        hh = wc0 * h0 + wc1 * h1 + bn                            # W_hh·h + b_hn, full vregs
        rz = _sigmoid(g[0:4, :] + hh[0:4, :])                    # one EUP op: r0,r1,z0,z1
        n = jnp.tanh(g[4:6, :] + rz[0:2, :] * hh[4:6, :])        # one EUP op: n0,n1
        z = rz[2:4, :]
        h = n + z * (h - n)                                      # == (1-z)*n + z*h

    h_ref[...] = h             # single (2, BT) store per chunk

    @pl.when(s == pl.num_programs(1) - 1)
    def _finalize():
        # Linear(2 -> 1) + Sigmoid on the final hidden state; lane-dense (1, BT) store.
        logit = wout_ref[0] * h[0:1, :] + wout_ref[1] * h[1:2, :] + bout_ref[0]
        o_ref[...] = _sigmoid(logit)


def init_params(key):
    """PyTorch-layout params: weight_ih (3H,E), weight_hh (3H,H), biases (3H,), out (1,H)/(1,)."""
    ks = jax.random.split(key, 7)
    scale = 0.3
    emb = scale * jax.random.normal(ks[0], (VOCAB_SIZE, EMBED_DIM), jnp.float32)
    emb = emb.at[0].set(0.0)  # padding_idx=0
    return {
        "embedding": emb,
        "weight_ih": scale * jax.random.normal(ks[1], (NGATES, EMBED_DIM), jnp.float32),
        "weight_hh": scale * jax.random.normal(ks[2], (NGATES, HIDDEN), jnp.float32),
        "bias_ih": scale * jax.random.normal(ks[3], (NGATES,), jnp.float32),
        "bias_hh": scale * jax.random.normal(ks[4], (NGATES,), jnp.float32),
        "out_w": scale * jax.random.normal(ks[5], (1, HIDDEN), jnp.float32),
        "out_b": scale * jax.random.normal(ks[6], (1,), jnp.float32),
    }


def my_rnn_forward(batch_ind, params, *, batch_tile=LANES, stream_dtype=jnp.float32):
    """batch_ind: (seq, batch) int32 token ids. Returns (batch,) f32 probabilities.

    stream_dtype=jnp.bfloat16 halves gi HBM/DMA bytes on v6e/v7x (compute stays f32).
    v7x note: with batch <= 128 there is a single batch tile, so the second TensorCore idles;
    co-batch requests to get >= 2 tiles rather than shrinking batch_tile below 128.
    """
    seq, batch = batch_ind.shape

    # ---------------- plain-JAX glue (off the serial critical path) ----------------
    # Fused per-token gate table: embedding @ W_ih^T with b_ir+b_hr / b_iz+b_hz folded in
    # (b_hn stays inside r * (W_hn h + b_hn)).  Gate axis padded 6 -> 8.
    b_gi = params["bias_ih"] + jnp.concatenate(
        [params["bias_hh"][:2 * HIDDEN], jnp.zeros((HIDDEN,), jnp.float32)])
    gate_tbl = params["embedding"] @ params["weight_ih"].T + b_gi      # (500, 6)
    gate_tbl = jnp.pad(gate_tbl, ((0, 0), (0, NGATES_PAD - NGATES)))   # (500, 8)

    # TODO(synk): the token-id gather is data-dependent; it stays in XLA.
    gi = jnp.transpose(gate_tbl[batch_ind], (0, 2, 1))                 # (seq, 8, batch)

    seq_chunk = min(seq, MAX_SEQ_CHUNK)
    seq_pad = _round_up(seq, seq_chunk)
    b_pad = _round_up(batch, batch_tile)
    gi = jnp.pad(gi, ((0, seq_pad - seq), (0, 0), (0, b_pad - batch)))
    if seq_pad != seq:
        # Identity-update tail padding: z rows = +40 -> sigmoid == 1 exactly in f32
        # -> h_new == h, so no per-step mask is needed on the serial chain.
        gi = gi.at[seq:, 2:4, :].set(40.0)
    gi = gi.astype(stream_dtype)

    # W_hh columns / b_hn pre-broadcast once to (3, 8, batch_tile): no in-kernel splats.
    hh_rows = jnp.zeros((3, NGATES_PAD), jnp.float32)
    hh_rows = hh_rows.at[0, :NGATES].set(params["weight_hh"][:, 0])
    hh_rows = hh_rows.at[1, :NGATES].set(params["weight_hh"][:, 1])
    hh_rows = hh_rows.at[2, 2 * HIDDEN:NGATES].set(params["bias_hh"][2 * HIDDEN:])
    hh_const = jnp.broadcast_to(hh_rows[:, :, None], (3, NGATES_PAD, batch_tile))

    grid = (b_pad // batch_tile, seq_pad // seq_chunk)   # (parallel batch tiles, serial seq)
    smem = pl.BlockSpec(memory_space=pltpu.MemorySpace.SMEM)
    kernel = functools.partial(gru_kernel, seq_chunk=seq_chunk)

    out = pl.pallas_call(
        kernel,
        out_shape=jax.ShapeDtypeStruct((1, b_pad), jnp.float32),
        grid=grid,
        in_specs=[
            # gi streamed in aligned (seq_chunk, 8, batch_tile) blocks, double-buffered.
            pl.BlockSpec((seq_chunk, NGATES_PAD, batch_tile), lambda b, s: (s, 0, b)),
            pl.BlockSpec((3, NGATES_PAD, batch_tile), lambda b, s: (0, 0, 0)),
            smem, smem,
        ],
        out_specs=pl.BlockSpec((1, batch_tile), lambda b, s: (0, b)),
        scratch_shapes=[pltpu.VMEM((HIDDEN, batch_tile), jnp.float32)],
        compiler_params=pltpu.CompilerParams(
            dimension_semantics=("parallel", "arbitrary")),
    )(gi,
      hh_const,
      params["out_w"][0],                  # (2,) -> SMEM
      params["out_b"])                     # (1,) -> SMEM
    return out[0, :batch]                  # strip batch padding


def my_rnn_forward_ref(batch_ind, params):
    """Pure-JAX reference mirroring PyTorch GRU semantics (gate order r, z, n)."""
    x = params["embedding"][batch_ind]                 # (seq, batch, E)
    batch = x.shape[1]
    w_ih, w_hh = params["weight_ih"], params["weight_hh"]
    b_ih, b_hh = params["bias_ih"], params["bias_hh"]
    h = jnp.zeros((batch, HIDDEN), jnp.float32)

    def step(h, x_t):
        gi = x_t @ w_ih.T + b_ih                       # (batch, 3H)
        gh = h @ w_hh.T + b_hh                         # (batch, 3H)
        r = jax.nn.sigmoid(gi[:, :HIDDEN] + gh[:, :HIDDEN])
        z = jax.nn.sigmoid(gi[:, HIDDEN:2 * HIDDEN] + gh[:, HIDDEN:2 * HIDDEN])
        n = jnp.tanh(gi[:, 2 * HIDDEN:] + r * gh[:, 2 * HIDDEN:])
        return (1.0 - z) * n + z * h, None

    h, _ = jax.lax.scan(step, h, x)
    logits = h @ params["out_w"].T + params["out_b"]   # (batch, 1)
    return jax.nn.sigmoid(logits)[:, 0]


if __name__ == "__main__":
    key = jax.random.PRNGKey(0)
    k_params, k_ids = jax.random.split(key)

    seq, batch = 8, 4
    params = init_params(k_params)
    batch_ind = jax.random.randint(k_ids, (seq, batch), 0, VOCAB_SIZE, dtype=jnp.int32)

    out = jax.block_until_ready(my_rnn_forward(batch_ind, params))
    assert out.shape == (batch,)

    ref = jax.block_until_ready(my_rnn_forward_ref(batch_ind, params))
    np.testing.assert_allclose(np.asarray(out), np.asarray(ref), rtol=2e-5, atol=2e-5)

    print("KERNEL_OK")
</pallas_src>

<mosaic_0001>
module attributes {stable_mosaic.version = 11 : i64} {
  func.func @gru_kernel(%arg0: i32, %arg1: i32, %arg2: memref<8x8x128xf32, #tpu.memory_space<vmem>>, %arg3: memref<3x8x128xf32, #tpu.memory_space<vmem>>, %arg4: memref<2xf32, #tpu.memory_space<smem>>, %arg5: memref<1xf32, #tpu.memory_space<smem>>, %arg6: memref<1x128xf32, #tpu.memory_space<vmem>>, %arg7: memref<2x128xf32, #tpu.memory_space<vmem>>) attributes {dimension_semantics = [#tpu.dimension_semantics<parallel>, #tpu.dimension_semantics<arbitrary>], iteration_bounds = array<i64: 1, 1>, scalar_prefetch = 0 : i64, scratch_operands = 1 : i64, tpu.core_type = #tpu.core_type<tc>, window_params = [{transform_indices = @transform_0, window_bounds = array<i64: 8, 8, 128>}, {pipeline_mode = #tpu.pipeline_mode<synchronous>, transform_indices = @transform_1, window_bounds = array<i64: 3, 8, 128>}, {transform_indices = @transform_2, window_bounds = array<i64: 2>}, {transform_indices = @transform_3, window_bounds = array<i64: 1>}, {transform_indices = @transform_4, window_bounds = array<i64: 1, 128>}]} {
    %c0_i32 = arith.constant 0 : i32
    %0 = arith.cmpi eq, %arg1, %c0_i32 : i32
    %1 = arith.extui %0 : i1 to i32
    %c0_i32_0 = arith.constant 0 : i32
    %2 = arith.cmpi ne, %1, %c0_i32_0 : i32
    scf.if %2 {
      %cst_55 = arith.constant 0.000000e+00 : f32
      %270 = vector.broadcast %cst_55 : f32 to vector<2x128xf32>
      %c0_56 = arith.constant 0 : index
      %c0_57 = arith.constant 0 : index
      %271 = vector.load %arg7[%c0_56, %c0_57] : memref<2x128xf32, #tpu.memory_space<vmem>>, vector<2x128xf32>
      tpu.vector_store %arg7[%c0_56, %c0_57], %270 {strides = array<i32>} : memref<2x128xf32, #tpu.memory_space<vmem>>, vector<2x128xf32>,
    } else {
    }
    %c0 = arith.constant 0 : index
    %c0_1 = arith.constant 0 : index
    %c0_2 = arith.constant 0 : index
    %3 = vector.load %arg3[%c0, %c0_1, %c0_2] : memref<3x8x128xf32, #tpu.memory_space<vmem>>, vector<1x8x128xf32>
    %4 = vector.shape_cast %3 : vector<1x8x128xf32> to vector<8x128xf32>
    %c1 = arith.constant 1 : index
    %c0_3 = arith.constant 0 : index
    %c0_4 = arith.constant 0 : index
    %5 = vector.load %arg3[%c1, %c0_3, %c0_4] : memref<3x8x128xf32, #tpu.memory_space<vmem>>, vector<1x8x128xf32>
    %6 = vector.shape_cast %5 : vector<1x8x128xf32> to vector<8x128xf32>
    %c2 = arith.constant 2 : index
    %c0_5 = arith.constant 0 : index
    %c0_6 = arith.constant 0 : index
    %7 = vector.load %arg3[%c2, %c0_5, %c0_6] : memref<3x8x128xf32, #tpu.memory_space<vmem>>, vector<1x8x128xf32>
    %8 = vector.shape_cast %7 : vector<1x8x128xf32> to vector<8x128xf32>
    %c0_7 = arith.constant 0 : index
    %c0_8 = arith.constant 0 : index
    %9 = vector.load %arg7[%c0_7, %c0_8] : memref<2x128xf32, #tpu.memory_space<vmem>>, vector<2x128xf32>
    %c0_9 = arith.constant 0 : index
    %c0_10 = arith.constant 0 : index
    %c0_11 = arith.constant 0 : index
    %10 = vector.load %arg2[%c0_9, %c0_10, %c0_11] : memref<8x8x128xf32, #tpu.memory_space<vmem>>, vector<1x8x128xf32>
    %11 = vector.shape_cast %10 : vector<1x8x128xf32> to vector<8x128xf32>
    %12 = vector.extract_strided_slice %9 {offsets = [0, 0], sizes = [1, 128], strides = [1, 1]} : vector<2x128xf32> to vector<1x128xf32>
    %13 = vector.shape_cast %12 : vector<1x128xf32> to vector<1x128xf32>
    %14 = vector.broadcast %13 : vector<1x128xf32> to vector<8x128xf32>
    %15 = vector.extract_strided_slice %9 {offsets = [1, 0], sizes = [1, 128], strides = [1, 1]} : vector<2x128xf32> to vector<1x128xf32>
    %16 = vector.shape_cast %15 : vector<1x128xf32> to vector<1x128xf32>
    %17 = vector.broadcast %16 : vector<1x128xf32> to vector<8x128xf32>
    %18 = arith.mulf %4, %14 : vector<8x128xf32>
    %19 = arith.mulf %6, %17 : vector<8x128xf32>
    %20 = arith.addf %18, %19 : vector<8x128xf32>
    %21 = arith.addf %20, %8 : vector<8x128xf32>
    %22 = vector.extract_strided_slice %11 {offsets = [0, 0], sizes = [4, 128], strides = [1, 1]} : vector<8x128xf32> to vector<4x128xf32>
    %23 = vector.extract_strided_slice %21 {offsets = [0, 0], sizes = [4, 128], strides = [1, 1]} : vector<8x128xf32> to vector<4x128xf32>
    %24 = arith.addf %22, %23 : vector<4x128xf32>
    %cst = arith.constant 5.000000e-01 : f32
    %25 = vector.broadcast %cst : f32 to vector<4x128xf32>
    %26 = arith.mulf %25, %24 : vector<4x128xf32>
    %27 = math.tanh %26 : vector<4x128xf32>
    %cst_12 = arith.constant 5.000000e-01 : f32
    %28 = vector.broadcast %cst_12 : f32 to vector<4x128xf32>
    %29 = arith.mulf %28, %27 : vector<4x128xf32>
    %cst_13 = arith.constant 5.000000e-01 : f32
    %30 = vector.broadcast %cst_13 : f32 to vector<4x128xf32>
    %31 = arith.addf %29, %30 : vector<4x128xf32>
    %32 = vector.extract_strided_slice %11 {offsets = [4, 0], sizes = [2, 128], strides = [1, 1]} : vector<8x128xf32> to vector<2x128xf32>
    %33 = vector.extract_strided_slice %31 {offsets = [0, 0], sizes = [2, 128], strides = [1, 1]} : vector<4x128xf32> to vector<2x128xf32>
    %34 = vector.extract_strided_slice %21 {offsets = [4, 0], sizes = [2, 128], strides = [1, 1]} : vector<8x128xf32> to vector<2x128xf32>
    %35 = arith.mulf %33, %34 : vector<2x128xf32>
    %36 = arith.addf %32, %35 : vector<2x128xf32>
    %37 = math.tanh %36 : vector<2x128xf32>
    %38 = vector.extract_strided_slice %31 {offsets = [2, 0], sizes = [2, 128], strides = [1, 1]} : vector<4x128xf32> to vector<2x128xf32>
    %39 = arith.subf %9, %37 : vector<2x128xf32>
    %40 = arith.mulf %38, %39 : vector<2x128xf32>
    %41 = arith.addf %37, %40 : vector<2x128xf32>
    %c1_14 = arith.constant 1 : index
    %c0_15 = arith.constant 0 : index
    %c0_16 = arith.constant 0 : index
    %42 = vector.load %arg2[%c1_14, %c0_15, %c0_16] : memref<8x8x128xf32, #tpu.memory_space<vmem>>, vector<1x8x128xf32>
    %43 = vector.shape_cast %42 : vector<1x8x128xf32> to vector<8x128xf32>
    %44 = vector.extract_strided_slice %41 {offsets = [0, 0], sizes = [1, 128], strides = [1, 1]} : vector<2x128xf32> to vector<1x128xf32>
    %45 = vector.shape_cast %44 : vector<1x128xf32> to vector<1x128xf32>
    %46 = vector.broadcast %45 : vector<1x128xf32> to vector<8x128xf32>
    %47 = vector.extract_strided_slice %41 {offsets = [1, 0], sizes = [1, 128], strides = [1, 1]} : vector<2x128xf32> to vector<1x128xf32>
    %48 = vector.shape_cast %47 : vector<1x128xf32> to vector<1x128xf32>
    %49 = vector.broadcast %48 : vector<1x128xf32> to vector<8x128xf32>
    %50 = arith.mulf %4, %46 : vector<8x128xf32>
    %51 = arith.mulf %6, %49 : vector<8x128xf32>
    %52 = arith.addf %50, %51 : vector<8x128xf32>
    %53 = arith.addf %52, %8 : vector<8x128xf32>
    %54 = vector.extract_strided_slice %43 {offsets = [0, 0], sizes = [4, 128], strides = [1, 1]} : vector<8x128xf32> to vector<4x128xf32>
    %55 = vector.extract_strided_slice %53 {offsets = [0, 0], sizes = [4, 128], strides = [1, 1]} : vector<8x128xf32> to vector<4x128xf32>
    %56 = arith.addf %54, %55 : vector<4x128xf32>
    %cst_17 = arith.constant 5.000000e-01 : f32
    %57 = vector.broadcast %cst_17 : f32 to vector<4x128xf32>
    %58 = arith.mulf %57, %56 : vector<4x128xf32>
    %59 = math.tanh %58 : vector<4x128xf32>
    %cst_18 = arith.constant 5.000000e-01 : f32
    %60 = vector.broadcast %cst_18 : f32 to vector<4x128xf32>
    %61 = arith.mulf %60, %59 : vector<4x128xf32>
    %cst_19 = arith.constant 5.000000e-01 : f32
    %62 = vector.broadcast %cst_19 : f32 to vector<4x128xf32>
    %63 = arith.addf %61, %62 : vector<4x128xf32>
    %64 = vector.extract_strided_slice %43 {offsets = [4, 0], sizes = [2, 128], strides = [1, 1]} : vector<8x128xf32> to vector<2x128xf32>
    %65 = vector.extract_strided_slice %63 {offsets = [0, 0], sizes = [2, 128], strides = [1, 1]} : vector<4x128xf32> to vector<2x128xf32>
    %66 = vector.extract_strided_slice %53 {offsets = [4, 0], sizes = [2, 128], strides = [1, 1]} : vector<8x128xf32> to vector<2x128xf32>
    %67 = arith.mulf %65, %66 : vector<2x128xf32>
    %68 = arith.addf %64, %67 : vector<2x128xf32>
    %69 = math.tanh %68 : vector<2x128xf32>
    %70 = vector.extract_strided_slice %63 {offsets = [2, 0], sizes = [2, 128], strides = [1, 1]} : vector<4x128xf32> to vector<2x128xf32>
    %71 = arith.subf %41, %69 : vector<2x128xf32>
    %72 = arith.mulf %70, %71 : vector<2x128xf32>
    %73 = arith.addf %69, %72 : vector<2x128xf32>
    %c2_20 = arith.constant 2 : index
    %c0_21 = arith.constant 0 : index
    %c0_22 = arith.constant 0 : index
    %74 = vector.load %arg2[%c2_20, %c0_21, %c0_22] : memref<8x8x128xf32, #tpu.memory_space<vmem>>, vector<1x8x128xf32>
    %75 = vector.shape_cast %74 : vector<1x8x128xf32> to vector<8x128xf32>
    %76 = vector.extract_strided_slice %73 {offsets = [0, 0], sizes = [1, 128], strides = [1, 1]} : vector<2x128xf32> to vector<1x128xf32>
    %77 = vector.shape_cast %76 : vector<1x128xf32> to vector<1x128xf32>
    %78 = vector.broadcast %77 : vector<1x128xf32> to vector<8x128xf32>
    %79 = vector.extract_strided_slice %73 {offsets = [1, 0], sizes = [1, 128], strides = [1, 1]} : vector<2x128xf32> to vector<1x128xf32>
    %80 = vector.shape_cast %79 : vector<1x128xf32> to vector<1x128xf32>
    %81 = vector.broadcast %80 : vector<1x128xf32> to vector<8x128xf32>
    %82 = arith.mulf %4, %78 : vector<8x128xf32>
    %83 = arith.mulf %6, %81 : vector<8x128xf32>
    %84 = arith.addf %82, %83 : vector<8x128xf32>
    %85 = arith.addf %84, %8 : vector<8x128xf32>
    %86 = vector.extract_strided_slice %75 {offsets = [0, 0], sizes = [4, 128], strides = [1, 1]} : vector<8x128xf32> to vector<4x128xf32>
    %87 = vector.extract_strided_slice %85 {offsets = [0, 0], sizes = [4, 128], strides = [1, 1]} : vector<8x128xf32> to vector<4x128xf32>
    %88 = arith.addf %86, %87 : vector<4x128xf32>
    %cst_23 = arith.constant 5.000000e-01 : f32
    %89 = vector.broadcast %cst_23 : f32 to vector<4x128xf32>
    %90 = arith.mulf %89, %88 : vector<4x128xf32>
    %91 = math.tanh %90 : vector<4x128xf32>
    %cst_24 = arith.constant 5.000000e-01 : f32
    %92 = vector.broadcast %cst_24 : f32 to vector<4x128xf32>
    %93 = arith.mulf %92, %91 : vector<4x128xf32>
    %cst_25 = arith.constant 5.000000e-01 : f32
    %94 = vector.broadcast %cst_25 : f32 to vector<4x128xf32>
    %95 = arith.addf %93, %94 : vector<4x128xf32>
    %96 = vector.extract_strided_slice %75 {offsets = [4, 0], sizes = [2, 128], strides = [1, 1]} : vector<8x128xf32> to vector<2x128xf32>
    %97 = vector.extract_strided_slice %95 {offsets = [0, 0], sizes = [2, 128], strides = [1, 1]} : vector<4x128xf32> to vector<2x128xf32>
    %98 = vector.extract_strided_slice %85 {offsets = [4, 0], sizes = [2, 128], strides = [1, 1]} : vector<8x128xf32> to vector<2x128xf32>
    %99 = arith.mulf %97, %98 : vector<2x128xf32>
    %100 = arith.addf %96, %99 : vector<2x128xf32>
    %101 = math.tanh %100 : vector<2x128xf32>
    %102 = vector.extract_strided_slice %95 {offsets = [2, 0], sizes = [2, 128], strides = [1, 1]} : vector<4x128xf32> to vector<2x128xf32>
    %103 = arith.subf %73, %101 : vector<2x128xf32>
    %104 = arith.mulf %102, %103 : vector<2x128xf32>
    %105 = arith.addf %101, %104 : vector<2x128xf32>
    %c3 = arith.constant 3 : index
    %c0_26 = arith.constant 0 : index
    %c0_27 = arith.constant 0 : index
    %106 = vector.load %arg2[%c3, %c0_26, %c0_27] : memref<8x8x128xf32, #tpu.memory_space<vmem>>, vector<1x8x128xf32>
    %107 = vector.shape_cast %106 : vector<1x8x128xf32> to vector<8x128xf32>
    %108 = vector.extract_strided_slice %105 {offsets = [0, 0], sizes = [1, 128], strides = [1, 1]} : vector<2x128xf32> to vector<1x128xf32>
    %109 = vector.shape_cast %108 : vector<1x128xf32> to vector<1x128xf32>
    %110 = vector.broadcast %109 : vector<1x128xf32> to vector<8x128xf32>
    %111 = vector.extract_strided_slice %105 {offsets = [1, 0], sizes = [1, 128], strides = [1, 1]} : vector<2x128xf32> to vector<1x128xf32>
    %112 = vector.shape_cast %111 : vector<1x128xf32> to vector<1x128xf32>
    %113 = vector.broadcast %112 : vector<1x128xf32> to vector<8x128xf32>
    %114 = arith.mulf %4, %110 : vector<8x128xf32>
    %115 = arith.mulf %6, %113 : vector<8x128xf32>
    %116 = arith.addf %114, %115 : vector<8x128xf32>
    %117 = arith.addf %116, %8 : vector<8x128xf32>
    %118 = vector.extract_strided_slice %107 {offsets = [0, 0], sizes = [4, 128], strides = [1, 1]} : vector<8x128xf32> to vector<4x128xf32>
    %119 = vector.extract_strided_slice %117 {offsets = [0, 0], sizes = [4, 128], strides = [1, 1]} : vector<8x128xf32> to vector<4x128xf32>
    %120 = arith.addf %118, %119 : vector<4x128xf32>
    %cst_28 = arith.constant 5.000000e-01 : f32
    %121 = vector.broadcast %cst_28 : f32 to vector<4x128xf32>
    %122 = arith.mulf %121, %120 : vector<4x128xf32>
    %123 = math.tanh %122 : vector<4x128xf32>
    %cst_29 = arith.constant 5.000000e-01 : f32
    %124 = vector.broadcast %cst_29 : f32 to vector<4x128xf32>
    %125 = arith.mulf %124, %123 : vector<4x128xf32>
    %cst_30 = arith.constant 5.000000e-01 : f32
    %126 = vector.broadcast %cst_30 : f32 to vector<4x128xf32>
    %127 = arith.addf %125, %126 : vector<4x128xf32>
    %128 = vector.extract_strided_slice %107 {offsets = [4, 0], sizes = [2, 128], strides = [1, 1]} : vector<8x128xf32> to vector<2x128xf32>
    %129 = vector.extract_strided_slice %127 {offsets = [0, 0], sizes = [2, 128], strides = [1, 1]} : vector<4x128xf32> to vector<2x128xf32>
    %130 = vector.extract_strided_slice %117 {offsets = [4, 0], sizes = [2, 128], strides = [1, 1]} : vector<8x128xf32> to vector<2x128xf32>
    %131 = arith.mulf %129, %130 : vector<2x128xf32>
    %132 = arith.addf %128, %131 : vector<2x128xf32>
    %133 = math.tanh %132 : vector<2x128xf32>
    %134 = vector.extract_strided_slice %127 {offsets = [2, 0], sizes = [2, 128], strides = [1, 1]} : vector<4x128xf32> to vector<2x128xf32>
    %135 = arith.subf %105, %133 : vector<2x128xf32>
    %136 = arith.mulf %134, %135 : vector<2x128xf32>
    %137 = arith.addf %133, %136 : vector<2x128xf32>
    %c4 = arith.constant 4 : index
    %c0_31 = arith.constant 0 : index
    %c0_32 = arith.constant 0 : index
    %138 = vector.load %arg2[%c4, %c0_31, %c0_32] : memref<8x8x128xf32, #tpu.memory_space<vmem>>, vector<1x8x128xf32>
    %139 = vector.shape_cast %138 : vector<1x8x128xf32> to vector<8x128xf32>
    %140 = vector.extract_strided_slice %137 {offsets = [0, 0], sizes = [1, 128], strides = [1, 1]} : vector<2x128xf32> to vector<1x128xf32>
    %141 = vector.shape_cast %140 : vector<1x128xf32> to vector<1x128xf32>
    %142 = vector.broadcast %141 : vector<1x128xf32> to vector<8x128xf32>
    %143 = vector.extract_strided_slice %137 {offsets = [1, 0], sizes = [1, 128], strides = [1, 1]} : vector<2x128xf32> to vector<1x128xf32>
    %144 = vector.shape_cast %143 : vector<1x128xf32> to vector<1x128xf32>
    %145 = vector.broadcast %144 : vector<1x128xf32> to vector<8x128xf32>
    %146 = arith.mulf %4, %142 : vector<8x128xf32>
    %147 = arith.mulf %6, %145 : vector<8x128xf32>
    %148 = arith.addf %146, %147 : vector<8x128xf32>
    %149 = arith.addf %148, %8 : vector<8x128xf32>
    %150 = vector.extract_strided_slice %139 {offsets = [0, 0], sizes = [4, 128], strides = [1, 1]} : vector<8x128xf32> to vector<4x128xf32>
    %151 = vector.extract_strided_slice %149 {offsets = [0, 0], sizes = [4, 128], strides = [1, 1]} : vector<8x128xf32> to vector<4x128xf32>
    %152 = arith.addf %150, %151 : vector<4x128xf32>
    %cst_33 = arith.constant 5.000000e-01 : f32
    %153 = vector.broadcast %cst_33 : f32 to vector<4x128xf32>
    %154 = arith.mulf %153, %152 : vector<4x128xf32>
    %155 = math.tanh %154 : vector<4x128xf32>
    %cst_34 = arith.constant 5.000000e-01 : f32
    %156 = vector.broadcast %cst_34 : f32 to vector<4x128xf32>
    %157 = arith.mulf %156, %155 : vector<4x128xf32>
    %cst_35 = arith.constant 5.000000e-01 : f32
    %158 = vector.broadcast %cst_35 : f32 to vector<4x128xf32>
    %159 = arith.addf %157, %158 : vector<4x128xf32>
    %160 = vector.extract_strided_slice %139 {offsets = [4, 0], sizes = [2, 128], strides = [1, 1]} : vector<8x128xf32> to vector<2x128xf32>
    %161 = vector.extract_strided_slice %159 {offsets = [0, 0], sizes = [2, 128], strides = [1, 1]} : vector<4x128xf32> to vector<2x128xf32>
    %162 = vector.extract_strided_slice %149 {offsets = [4, 0], sizes = [2, 128], strides = [1, 1]} : vector<8x128xf32> to vector<2x128xf32>
    %163 = arith.mulf %161, %162 : vector<2x128xf32>
    %164 = arith.addf %160, %163 : vector<2x128xf32>
    %165 = math.tanh %164 : vector<2x128xf32>
    %166 = vector.extract_strided_slice %159 {offsets = [2, 0], sizes = [2, 128], strides = [1, 1]} : vector<4x128xf32> to vector<2x128xf32>
    %167 = arith.subf %137, %165 : vector<2x128xf32>
    %168 = arith.mulf %166, %167 : vector<2x128xf32>
    %169 = arith.addf %165, %168 : vector<2x128xf32>
    %c5 = arith.constant 5 : index
    %c0_36 = arith.constant 0 : index
    %c0_37 = arith.constant 0 : index
    %170 = vector.load %arg2[%c5, %c0_36, %c0_37] : memref<8x8x128xf32, #tpu.memory_space<vmem>>, vector<1x8x128xf32>
    %171 = vector.shape_cast %170 : vector<1x8x128xf32> to vector<8x128xf32>
    %172 = vector.extract_strided_slice %169 {offsets = [0, 0], sizes = [1, 128], strides = [1, 1]} : vector<2x128xf32> to vector<1x128xf32>
    %173 = vector.shape_cast %172 : vector<1x128xf32> to vector<1x128xf32>
    %174 = vector.broadcast %173 : vector<1x128xf32> to vector<8x128xf32>
    %175 = vector.extract_strided_slice %169 {offsets = [1, 0], sizes = [1, 128], strides = [1, 1]} : vector<2x128xf32> to vector<1x128xf32>
    %176 = vector.shape_cast %175 : vector<1x128xf32> to vector<1x128xf32>
    %177 = vector.broadcast %176 : vector<1x128xf32> to vector<8x128xf32>
    %178 = arith.mulf %4, %174 : vector<8x128xf32>
    %179 = arith.mulf %6, %177 : vector<8x128xf32>
    %180 = arith.addf %178, %179 : vector<8x128xf32>
    %181 = arith.addf %180, %8 : vector<8x128xf32>
    %182 = vector.extract_strided_slice %171 {offsets = [0, 0], sizes = [4, 128], strides = [1, 1]} : vector<8x128xf32> to vector<4x128xf32>
    %183 = vector.extract_strided_slice %181 {offsets = [0, 0], sizes = [4, 128], strides = [1, 1]} : vector<8x128xf32> to vector<4x128xf32>
    %184 = arith.addf %182, %183 : vector<4x128xf32>
    %cst_38 = arith.constant 5.000000e-01 : f32
    %185 = vector.broadcast %cst_38 : f32 to vector<4x128xf32>
    %186 = arith.mulf %185, %184 : vector<4x128xf32>
    %187 = math.tanh %186 : vector<4x128xf32>
    %cst_39 = arith.constant 5.000000e-01 : f32
    %188 = vector.broadcast %cst_39 : f32 to vector<4x128xf32>
    %189 = arith.mulf %188, %187 : vector<4x128xf32>
    %cst_40 = arith.constant 5.000000e-01 : f32
    %190 = vector.broadcast %cst_40 : f32 to vector<4x128xf32>
    %191 = arith.addf %189, %190 : vector<4x128xf32>
    %192 = vector.extract_strided_slice %171 {offsets = [4, 0], sizes = [2, 128], strides = [1, 1]} : vector<8x128xf32> to vector<2x128xf32>
    %193 = vector.extract_strided_slice %191 {offsets = [0, 0], sizes = [2, 128], strides = [1, 1]} : vector<4x128xf32> to vector<2x128xf32>
    %194 = vector.extract_strided_slice %181 {offsets = [4, 0], sizes = [2, 128], strides = [1, 1]} : vector<8x128xf32> to vector<2x128xf32>
    %195 = arith.mulf %193, %194 : vector<2x128xf32>
    %196 = arith.addf %192, %195 : vector<2x128xf32>
    %197 = math.tanh %196 : vector<2x128xf32>
    %198 = vector.extract_strided_slice %191 {offsets = [2, 0], sizes = [2, 128], strides = [1, 1]} : vector<4x128xf32> to vector<2x128xf32>
    %199 = arith.subf %169, %197 : vector<2x128xf32>
    %200 = arith.mulf %198, %199 : vector<2x128xf32>
    %201 = arith.addf %197, %200 : vector<2x128xf32>
    %c6 = arith.constant 6 : index
    %c0_41 = arith.constant 0 : index
    %c0_42 = arith.constant 0 : index
    %202 = vector.load %arg2[%c6, %c0_41, %c0_42] : memref<8x8x128xf32, #tpu.memory_space<vmem>>, vector<1x8x128xf32>
    %203 = vector.shape_cast %202 : vector<1x8x128xf32> to vector<8x128xf32>
    %204 = vector.extract_strided_slice %201 {offsets = [0, 0], sizes = [1, 128], strides = [1, 1]} : vector<2x128xf32> to vector<1x128xf32>
    %205 = vector.shape_cast %204 : vector<1x128xf32> to vector<1x128xf32>
    %206 = vector.broadcast %205 : vector<1x128xf32> to vector<8x128xf32>
    %207 = vector.extract_strided_slice %201 {offsets = [1, 0], sizes = [1, 128], strides = [1, 1]} : vector<2x128xf32> to vector<1x128xf32>
    %208 = vector.shape_cast %207 : vector<1x128xf32> to vector<1x128xf32>
    %209 = vector.broadcast %208 : vector<1x128xf32> to vector<8x128xf32>
    %210 = arith.mulf %4, %206 : vector<8x128xf32>
    %211 = arith.mulf %6, %209 : vector<8x128xf32>
    %212 = arith.addf %210, %211 : vector<8x128xf32>
    %213 = arith.addf %212, %8 : vector<8x128xf32>
    %214 = vector.extract_strided_slice %203 {offsets = [0, 0], sizes = [4, 128], strides = [1, 1]} : vector<8x128xf32> to vector<4x128xf32>
    %215 = vector.extract_strided_slice %213 {offsets = [0, 0], sizes = [4, 128], strides = [1, 1]} : vector<8x128xf32> to vector<4x128xf32>
    %216 = arith.addf %214, %215 : vector<4x128xf32>
    %cst_43 = arith.constant 5.000000e-01 : f32
    %217 = vector.broadcast %cst_43 : f32 to vector<4x128xf32>
    %218 = arith.mulf %217, %216 : vector<4x128xf32>
    %219 = math.tanh %218 : vector<4x128xf32>
    %cst_44 = arith.constant 5.000000e-01 : f32
    %220 = vector.broadcast %cst_44 : f32 to vector<4x128xf32>
    %221 = arith.mulf %220, %219 : vector<4x128xf32>
    %cst_45 = arith.constant 5.000000e-01 : f32
    %222 = vector.broadcast %cst_45 : f32 to vector<4x128xf32>
    %223 = arith.addf %221, %222 : vector<4x128xf32>
    %224 = vector.extract_strided_slice %203 {offsets = [4, 0], sizes = [2, 128], strides = [1, 1]} : vector<8x128xf32> to vector<2x128xf32>
    %225 = vector.extract_strided_slice %223 {offsets = [0, 0], sizes = [2, 128], strides = [1, 1]} : vector<4x128xf32> to vector<2x128xf32>
    %226 = vector.extract_strided_slice %213 {offsets = [4, 0], sizes = [2, 128], strides = [1, 1]} : vector<8x128xf32> to vector<2x128xf32>
    %227 = arith.mulf %225, %226 : vector<2x128xf32>
    %228 = arith.addf %224, %227 : vector<2x128xf32>
    %229 = math.tanh %228 : vector<2x128xf32>
    %230 = vector.extract_strided_slice %223 {offsets = [2, 0], sizes = [2, 128], strides = [1, 1]} : vector<4x128xf32> to vector<2x128xf32>
    %231 = arith.subf %201, %229 : vector<2x128xf32>
    %232 = arith.mulf %230, %231 : vector<2x128xf32>
    %233 = arith.addf %229, %232 : vector<2x128xf32>
    %c7 = arith.constant 7 : index
    %c0_46 = arith.constant 0 : index
    %c0_47 = arith.constant 0 : index
    %234 = vector.load %arg2[%c7, %c0_46, %c0_47] : memref<8x8x128xf32, #tpu.memory_space<vmem>>, vector<1x8x128xf32>
    %235 = vector.shape_cast %234 : vector<1x8x128xf32> to vector<8x128xf32>
    %236 = vector.extract_strided_slice %233 {offsets = [0, 0], sizes = [1, 128], strides = [1, 1]} : vector<2x128xf32> to vector<1x128xf32>
    %237 = vector.shape_cast %236 : vector<1x128xf32> to vector<1x128xf32>
    %238 = vector.broadcast %237 : vector<1x128xf32> to vector<8x128xf32>
    %239 = vector.extract_strided_slice %233 {offsets = [1, 0], sizes = [1, 128], strides = [1, 1]} : vector<2x128xf32> to vector<1x128xf32>
    %240 = vector.shape_cast %239 : vector<1x128xf32> to vector<1x128xf32>
    %241 = vector.broadcast %240 : vector<1x128xf32> to vector<8x128xf32>
    %242 = arith.mulf %4, %238 : vector<8x128xf32>
    %243 = arith.mulf %6, %241 : vector<8x128xf32>
    %244 = arith.addf %242, %243 : vector<8x128xf32>
    %245 = arith.addf %244, %8 : vector<8x128xf32>
    %246 = vector.extract_strided_slice %235 {offsets = [0, 0], sizes = [4, 128], strides = [1, 1]} : vector<8x128xf32> to vector<4x128xf32>
    %247 = vector.extract_strided_slice %245 {offsets = [0, 0], sizes = [4, 128], strides = [1, 1]} : vector<8x128xf32> to vector<4x128xf32>
    %248 = arith.addf %246, %247 : vector<4x128xf32>
    %cst_48 = arith.constant 5.000000e-01 : f32
    %249 = vector.broadcast %cst_48 : f32 to vector<4x128xf32>
    %250 = arith.mulf %249, %248 : vector<4x128xf32>
    %251 = math.tanh %250 : vector<4x128xf32>
    %cst_49 = arith.constant 5.000000e-01 : f32
    %252 = vector.broadcast %cst_49 : f32 to vector<4x128xf32>
    %253 = arith.mulf %252, %251 : vector<4x128xf32>
    %cst_50 = arith.constant 5.000000e-01 : f32
    %254 = vector.broadcast %cst_50 : f32 to vector<4x128xf32>
    %255 = arith.addf %253, %254 : vector<4x128xf32>
    %256 = vector.extract_strided_slice %235 {offsets = [4, 0], sizes = [2, 128], strides = [1, 1]} : vector<8x128xf32> to vector<2x128xf32>
    %257 = vector.extract_strided_slice %255 {offsets = [0, 0], sizes = [2, 128], strides = [1, 1]} : vector<4x128xf32> to vector<2x128xf32>
    %258 = vector.extract_strided_slice %245 {offsets = [4, 0], sizes = [2, 128], strides = [1, 1]} : vector<8x128xf32> to vector<2x128xf32>
    %259 = arith.mulf %257, %258 : vector<2x128xf32>
    %260 = arith.addf %256, %259 : vector<2x128xf32>
    %261 = math.tanh %260 : vector<2x128xf32>
    %262 = vector.extract_strided_slice %255 {offsets = [2, 0], sizes = [2, 128], strides = [1, 1]} : vector<4x128xf32> to vector<2x128xf32>
    %263 = arith.subf %233, %261 : vector<2x128xf32>
    %264 = arith.mulf %262, %263 : vector<2x128xf32>
    %265 = arith.addf %261, %264 : vector<2x128xf32>
    %c0_51 = arith.constant 0 : index
    %c0_52 = arith.constant 0 : index
    %266 = vector.load %arg7[%c0_51, %c0_52] : memref<2x128xf32, #tpu.memory_space<vmem>>, vector<2x128xf32>
    tpu.vector_store %arg7[%c0_51, %c0_52], %265 {strides = array<i32>} : memref<2x128xf32, #tpu.memory_space<vmem>>, vector<2x128xf32>,
    %c0_i32_53 = arith.constant 0 : i32
    %267 = arith.cmpi eq, %arg1, %c0_i32_53 : i32
    %268 = arith.extui %267 : i1 to i32
    %c0_i32_54 = arith.constant 0 : i32
    %269 = arith.cmpi ne, %268, %c0_i32_54 : i32
    scf.if %269 {
      %c0_55 = arith.constant 0 : index
      %270 = memref.load %arg4[%c0_55] : memref<2xf32, #tpu.memory_space<smem>>
      %271 = vector.extract_strided_slice %265 {offsets = [0, 0], sizes = [1, 128], strides = [1, 1]} : vector<2x128xf32> to vector<1x128xf32>
      %272 = vector.broadcast %270 : f32 to vector<1x128xf32>
      %273 = arith.mulf %272, %271 : vector<1x128xf32>
      %c1_56 = arith.constant 1 : index
      %274 = memref.load %arg4[%c1_56] : memref<2xf32, #tpu.memory_space<smem>>
      %275 = vector.extract_strided_slice %265 {offsets = [1, 0], sizes = [1, 128], strides = [1, 1]} : vector<2x128xf32> to vector<1x128xf32>
      %276 = vector.broadcast %274 : f32 to vector<1x128xf32>
      %277 = arith.mulf %276, %275 : vector<1x128xf32>
      %278 = arith.addf %273, %277 : vector<1x128xf32>
      %c0_57 = arith.constant 0 : index
      %279 = memref.load %arg5[%c0_57] : memref<1xf32, #tpu.memory_space<smem>>
      %280 = vector.broadcast %279 : f32 to vector<1x128xf32>
      %281 = arith.addf %278, %280 : vector<1x128xf32>
      %cst_58 = arith.constant 5.000000e-01 : f32
      %282 = vector.broadcast %cst_58 : f32 to vector<1x128xf32>
      %283 = arith.mulf %282, %281 : vector<1x128xf32>
      %284 = math.tanh %283 : vector<1x128xf32>
      %cst_59 = arith.constant 5.000000e-01 : f32
      %285 = vector.broadcast %cst_59 : f32 to vector<1x128xf32>
      %286 = arith.mulf %285, %284 : vector<1x128xf32>
      %cst_60 = arith.constant 5.000000e-01 : f32
      %287 = vector.broadcast %cst_60 : f32 to vector<1x128xf32>
      %288 = arith.addf %286, %287 : vector<1x128xf32>
      %c0_61 = arith.constant 0 : index
      %c0_62 = arith.constant 0 : index
      %289 = vector.load %arg6[%c0_61, %c0_62] : memref<1x128xf32, #tpu.memory_space<vmem>>, vector<1x128xf32>
      tpu.vector_store %arg6[%c0_61, %c0_62], %288 {strides = array<i32>} : memref<1x128xf32, #tpu.memory_space<vmem>>, vector<1x128xf32>,
    } else {
    }
    return
  }
  func.func @transform_0(%arg0: i32, %arg1: i32) -> (i32, i32, i32) {
    %c0_i32 = arith.constant 0 : i32
    %c0_i32_0 = arith.constant 0 : i32
    return %arg1, %c0_i32, %arg0 : i32, i32, i32
  }
  func.func @transform_1(%arg0: i32, %arg1: i32) -> (i32, i32, i32) {
    %c0_i32 = arith.constant 0 : i32
    %c0_i32_0 = arith.constant 0 : i32
    %c0_i32_1 = arith.constant 0 : i32
    %c0_i32_2 = arith.constant 0 : i32
    return %c0_i32, %c0_i32_0, %c0_i32_1 : i32, i32, i32
  }
  func.func @transform_2(%arg0: i32, %arg1: i32) -> i32 {
    %c0_i32 = arith.constant 0 : i32
    %c0_i32_0 = arith.constant 0 : i32
    return %c0_i32 : i32
  }
  func.func @transform_3(%arg0: i32, %arg1: i32) -> i32 {
    %c0_i32 = arith.constant 0 : i32
    %c0_i32_0 = arith.constant 0 : i32
    return %c0_i32 : i32
  }
  func.func @transform_4(%arg0: i32, %arg1: i32) -> (i32, i32) {
    %c0_i32 = arith.constant 0 : i32
    %c0_i32_0 = arith.constant 0 : i32
    return %c0_i32, %arg0 : i32, i32
  }
}

</mosaic_0001>

<llo_original>
// kernel: tpu_custom_call.1
$region0: #{tpu_custom_call.1}
  #allocation0 [shape = 'u32[]', space=smem, size = 0x4, offset = 0x4, fixed_abs, tag = 'smem constant byte address 0x4 - core index']
  #allocation1 [shape = 'u32[144,128]{1,0:T(1,128)}', space=vmem, size = 0x12000, scoped, tag = 'internal scratch']
  #allocation2 [shape = 'f32[2,128]{1,0:T(2,128)}', space=vmem, size = 0x400, scoped, tag = 'scratch operand']
  #allocation3 [shape = 'f32[1]{0:T(128)S(6)}', space=smem, size = 0x200, scoped, tag = 'scoped memory for tpu_custom_call.1']
  %s0 = inlined_call_operand.hbm [shape: f32[8,8,128], index: 0, kind: input, shape index: {}]
  %s1 = inlined_call_operand.hbm [shape: f32[3,8,128], index: 1, kind: input, shape index: {}]
  %s2 = inlined_call_operand.vmem [shape: f32[2], index: 2, kind: input, shape index: {}]
  %s3 = inlined_call_operand.<no memory space> [shape: f32[1], index: 3, kind: input, shape index: {}]
  %s4 = inlined_call_operand.hbm [shape: f32[1,128], index: 4, kind: output, shape index: {}]
  %s5 = sld [smem:[#allocation0]]
  $region46: #{tpu_custom_call.1} parent=0
    _
  %s7 = ssub.s32 1, %s5
  %s8 = scalar_select 0, %s7, %s5
  %9 = sst [smem:[#allocation3]] %s3
  $region1: #{tpu_custom_call.1} parent=0
    #allocation4 [shape = 'u8[32768]{0}', space=vmem, size = 0x8000, scoped, tag = 'input window, operand 0, single buffered']
    #allocation5 [shape = 's32[1]{0}', space=sflag, size = 0x4, scoped, tag = 'scoped memory for tpu_custom_call.1']
    #allocation6 [shape = 's32[1]{0}', space=sflag, size = 0x4, scoped, tag = 'scoped memory for tpu_custom_call.1']
    #allocation7 [shape = 's32[1]{0}', space=sflag, size = 0x4, scoped, tag = 'scoped memory for tpu_custom_call.1']
    #allocation8 [shape = 'u8[12288]{0}', space=vmem, size = 0x3000, scoped, tag = 'input window, operand 1, single buffered']
    #allocation9 [shape = 's32[1]{0}', space=sflag, size = 0x4, scoped, tag = 'scoped memory for tpu_custom_call.1']
    #allocation10 [shape = 'u8[512]{0}', space=smem, size = 0x200, scoped, tag = 'input window, operand 2, single buffered']
    #allocation11 [shape = 'u8[512]{0}', space=vmem, size = 0x400, scoped, tag = 'output window, operand 0, single buffered']
    %10 = vsyncpa [#allocation5], 0
    %11 = vsyncpa [#allocation9], 0
    %12 = vsyncpa [#allocation7], 0
    %13 = vsyncpa [#allocation6], 0
    // Predicated region
    $region2: #{tpu_custom_call.1} parent=1 // pred_check
      _
    $region3: #{tpu_custom_call.1} parent=1 // pred_check_branch
      %15 = sbr.rel (0) target = $region5
    $region4: #{tpu_custom_call.1} parent=1 // pred_region
      %s17 = ssub.s32 1024, 1024
      %18 = vsyncadd [#allocation5], %s17
      %s19 = sshll.u32 [#allocation4], 4
      %s20 = int_to_ptr.vmem [resolvable:$true] %s19
      %25 = dma.hbm_to_vmem [thread:$0]  %s0, 1024, %s20, [#allocation5], 128, 128, 8
    $region5: #{tpu_custom_call.1} parent=1 // pred_fallthru
      _
    // Predicated region
    $region6: #{tpu_custom_call.1} parent=1 // pred_check
      _
    $region7: #{tpu_custom_call.1} parent=1 // pred_check_branch
      %27 = sbr.rel (0) target = $region9
    $region8: #{tpu_custom_call.1} parent=1 // pred_region
      %s29 = ssub.s32 384, 384
      %30 = vsyncadd [#allocation9], %s29
      %s31 = sshll.u32 [#allocation8], 4
      %s32 = int_to_ptr.vmem [resolvable:$true] %s31
      %37 = dma.hbm_to_vmem [thread:$0]  %s1, 384, %s32, [#allocation9], 128, 128, 8
    $region9: #{tpu_custom_call.1} parent=1 // pred_fallthru
      _
    // Predicated region
    $region10: #{tpu_custom_call.1} parent=1 // pred_check
      _
    $region11: #{tpu_custom_call.1} parent=1 // pred_check_branch
      %39 = sbr.rel (0) target = $region13
    $region12: #{tpu_custom_call.1} parent=1 // pred_region
      %s41 = ssub.s32 16, 16
      %42 = vsyncadd [#allocation7], %s41
      %s44 = sshll.u32 %s2, 4
      %s45 = int_to_ptr.vmem [resolvable:$true] %s44
      %47 = dma.vmem_to_smem %s45, 16, [#allocation10], [#allocation7]
    $region13: #{tpu_custom_call.1} parent=1 // pred_fallthru
      _
    // Predicated region
    $region14: #{tpu_custom_call.1} parent=1 // pred_check
      _
    $region15: #{tpu_custom_call.1} parent=1 // pred_check_branch
      %49 = sbr.rel (0) target = $region17
    $region16: #{tpu_custom_call.1} parent=1 // pred_region
      _
    $region17: #{tpu_custom_call.1} parent=1 // pred_fallthru
      _
    // Predicated region
    $region18: #{tpu_custom_call.1} parent=1 // pred_check
      _
    $region19: #{tpu_custom_call.1} parent=1 // pred_check_branch
      %51 = sbr.rel (0) target = $region21
    $region20: #{tpu_custom_call.1} parent=1 // pred_region
      %52 = dma.done [#allocation5], 1024
    $region21: #{tpu_custom_call.1} parent=1 // pred_fallthru
      _
    // Predicated region
    $region22: #{tpu_custom_call.1} parent=1 // pred_check
      _
    $region23: #{tpu_custom_call.1} parent=1 // pred_check_branch
      %54 = sbr.rel (0) target = $region25
    $region24: #{tpu_custom_call.1} parent=1 // pred_region
      %55 = dma.done [#allocation9], 384
    $region25: #{tpu_custom_call.1} parent=1 // pred_fallthru
      _
    // Predicated region
    $region26: #{tpu_custom_call.1} parent=1 // pred_check
      _
    $region27: #{tpu_custom_call.1} parent=1 // pred_check_branch
      %57 = sbr.rel (0) target = $region29
    $region28: #{tpu_custom_call.1} parent=1 // pred_region
      %58 = dma.done [#allocation7], 16
    $region29: #{tpu_custom_call.1} parent=1 // pred_fallthru
      _
    %59 = sfence
    %p60 = scmp.eq.s32.totalorder 0, 0
    // Predicated region
    $region30: #{tpu_custom_call.1} parent=1 // pred_check
      %p61 = pneg %p60
    $region31: #{tpu_custom_call.1} parent=1 // pred_check_branch
      %63 = sbr.rel (%p61) target = $region33
    $region32: #{tpu_custom_call.1} parent=1 // pred_region
      %64 = vst [vmem:[#allocation2] sm:$0x3] 0.0
    $region33: #{tpu_custom_call.1} parent=1 // pred_fallthru
      _
    %v65 = vld [vmem:[#allocation8] sm:$0xff]
    %s66 = scalar_lea.vmem [#allocation8], 8
    %v67 = vld [vmem:[%s66] sm:$0xff]
    %s68 = scalar_lea.vmem [#allocation8], 16
    %v69 = vld [vmem:[%s68] sm:$0xff]
    %v70 = vld [vmem:[#allocation2] sm:$0x3]
    %v71 = vld [vmem:[#allocation4] sm:$0xff]
    %v72 = vlaneseq
    %v73 = vshrl.u32 %v72, 7
    %v74 = vsub.s32 0, %v73
    %v75 = vrot.slane %v70, %v74
    %v76 = vlaneseq
    %v77 = vshrl.u32 %v76, 7
    %v78 = vsub.s32 1, %v77
    %v79 = vrot.slane %v70, %v78
    %v80 = vmul.f32 %v65, %v75
    %v81 = vmul.f32 %v67, %v79
    %v82 = vadd.f32 %v80, %v81
    %v83 = vadd.f32 %v82, %v69
    %v84 = vadd.f32 %v71, %v83
    %v85 = vmul.f32 %v84, 0.5
    %v86 = vtanh.pop %v85
    %v87 = vmul.f32 %v86, 0.5
    %v88 = vadd.f32 %v87, 0.5
    %v90 = vrot.slane %v83, 4
    %v92 = vmul.f32 %v88, %v90
    %v94 = vrot.slane %v92, 4
    %v96 = vadd.f32 %v71, %v94
    %v97 = vtanh.pop %v96
    %v99 = vrot.slane %v97, 4
    %v101 = vsub.f32 %v70, %v99
    %v103 = vrot.slane %v101, 6
    %v105 = vmul.f32 %v88, %v103
    %v107 = vrot.slane %v105, 6
    %v109 = vadd.f32 %v97, %v107
    %s110 = scalar_lea.vmem [#allocation4], 8
    %v111 = vld [vmem:[%s110] sm:$0xff]
    %v112 = vlaneseq
    %v113 = vshrl.u32 %v112, 7
    %v114 = vsub.s32 4, %v113
    %v115 = vrot.slane %v109, %v114
    %v116 = vlaneseq
    %v117 = vshrl.u32 %v116, 7
    %v118 = vsub.s32 5, %v117
    %v119 = vrot.slane %v109, %v118
    %v120 = vmul.f32 %v65, %v115
    %v121 = vmul.f32 %v67, %v119
    %v122 = vadd.f32 %v120, %v121
    %v123 = vadd.f32 %v122, %v69
    %v124 = vadd.f32 %v111, %v123
    %v125 = vmul.f32 %v124, 0.5
    %v126 = vtanh.pop %v125
    %v127 = vmul.f32 %v126, 0.5
    %v128 = vadd.f32 %v127, 0.5
    %v130 = vrot.slane %v123, 4
    %v132 = vmul.f32 %v128, %v130
    %v134 = vrot.slane %v132, 4
    %v136 = vadd.f32 %v111, %v134
    %v137 = vtanh.pop %v136
    %v138 = vsub.f32 %v109, %v137
    %v140 = vrot.slane %v138, 2
    %v142 = vmul.f32 %v128, %v140
    %v144 = vrot.slane %v142, 6
    %v146 = vadd.f32 %v137, %v144
    %s147 = scalar_lea.vmem [#allocation4], 16
    %v148 = vld [vmem:[%s147] sm:$0xff]
    %v149 = vlaneseq
    %v150 = vshrl.u32 %v149, 7
    %v151 = vsub.s32 4, %v150
    %v152 = vrot.slane %v146, %v151
    %v153 = vlaneseq
    %v154 = vshrl.u32 %v153, 7
    %v155 = vsub.s32 5, %v154
    %v156 = vrot.slane %v146, %v155
    %v157 = vmul.f32 %v65, %v152
    %v158 = vmul.f32 %v67, %v156
    %v159 = vadd.f32 %v157, %v158
    %v160 = vadd.f32 %v159, %v69
    %v161 = vadd.f32 %v148, %v160
    %v162 = vmul.f32 %v161, 0.5
    %v163 = vtanh.pop %v162
    %v164 = vmul.f32 %v163, 0.5
    %v165 = vadd.f32 %v164, 0.5
    %v167 = vrot.slane %v160, 4
    %v169 = vmul.f32 %v165, %v167
    %v171 = vrot.slane %v169, 4
    %v173 = vadd.f32 %v148, %v171
    %v174 = vtanh.pop %v173
    %v175 = vsub.f32 %v146, %v174
    %v177 = vrot.slane %v175, 2
    %v179 = vmul.f32 %v165, %v177
    %v181 = vrot.slane %v179, 6
    %v183 = vadd.f32 %v174, %v181
    %s184 = scalar_lea.vmem [#allocation4], 24
    %v185 = vld [vmem:[%s184] sm:$0xff]
    %v186 = vlaneseq
    %v187 = vshrl.u32 %v186, 7
    %v188 = vsub.s32 4, %v187
    %v189 = vrot.slane %v183, %v188
    %v190 = vlaneseq
    %v191 = vshrl.u32 %v190, 7
    %v192 = vsub.s32 5, %v191
    %v193 = vrot.slane %v183, %v192
    %v194 = vmul.f32 %v65, %v189
    %v195 = vmul.f32 %v67, %v193
    %v196 = vadd.f32 %v194, %v195
    %v197 = vadd.f32 %v196, %v69
    %v198 = vadd.f32 %v185, %v197
    %v199 = vmul.f32 %v198, 0.5
    %v200 = vtanh.pop %v199
    %v201 = vmul.f32 %v200, 0.5
    %v202 = vadd.f32 %v201, 0.5
    %v204 = vrot.slane %v197, 4
    %v206 = vmul.f32 %v202, %v204
    %v208 = vrot.slane %v206, 4
    %v210 = vadd.f32 %v185, %v208
    %v211 = vtanh.pop %v210
    %v212 = vsub.f32 %v183, %v211
    %v214 = vrot.slane %v212, 2
    %v216 = vmul.f32 %v202, %v214
    %v218 = vrot.slane %v216, 6
    %v220 = vadd.f32 %v211, %v218
    %s221 = scalar_lea.vmem [#allocation4], 32
    %v222 = vld [vmem:[%s221] sm:$0xff]
    %v223 = vlaneseq
    %v224 = vshrl.u32 %v223, 7
    %v225 = vsub.s32 4, %v224
    %v226 = vrot.slane %v220, %v225
    %v227 = vlaneseq
    %v228 = vshrl.u32 %v227, 7
    %v229 = vsub.s32 5, %v228
    %v230 = vrot.slane %v220, %v229
    %v231 = vmul.f32 %v65, %v226
    %v232 = vmul.f32 %v67, %v230
    %v233 = vadd.f32 %v231, %v232
    %v234 = vadd.f32 %v233, %v69
    %v235 = vadd.f32 %v222, %v234
    %v236 = vmul.f32 %v235, 0.5
    %v237 = vtanh.pop %v236
    %v238 = vmul.f32 %v237, 0.5
    %v239 = vadd.f32 %v238, 0.5
    %v241 = vrot.slane %v234, 4
    %v243 = vmul.f32 %v239, %v241
    %v245 = vrot.slane %v243, 4
    %v247 = vadd.f32 %v222, %v245
    %v248 = vtanh.pop %v247
    %v249 = vsub.f32 %v220, %v248
    %v251 = vrot.slane %v249, 2
    %v253 = vmul.f32 %v239, %v251
    %v255 = vrot.slane %v253, 6
    %v257 = vadd.f32 %v248, %v255
    %s258 = scalar_lea.vmem [#allocation4], 40
    %v259 = vld [vmem:[%s258] sm:$0xff]
    %v260 = vlaneseq
    %v261 = vshrl.u32 %v260, 7
    %v262 = vsub.s32 4, %v261
    %v263 = vrot.slane %v257, %v262
    %v264 = vlaneseq
    %v265 = vshrl.u32 %v264, 7
    %v266 = vsub.s32 5, %v265
    %v267 = vrot.slane %v257, %v266
    %v268 = vmul.f32 %v65, %v263
    %v269 = vmul.f32 %v67, %v267
    %v270 = vadd.f32 %v268, %v269
    %v271 = vadd.f32 %v270, %v69
    %v272 = vadd.f32 %v259, %v271
    %v273 = vmul.f32 %v272, 0.5
    %v274 = vtanh.pop %v273
    %v275 = vmul.f32 %v274, 0.5
    %v276 = vadd.f32 %v275, 0.5
    %v278 = vrot.slane %v271, 4
    %v280 = vmul.f32 %v276, %v278
    %v282 = vrot.slane %v280, 4
    %v284 = vadd.f32 %v259, %v282
    %v285 = vtanh.pop %v284
    %v286 = vsub.f32 %v257, %v285
    %v288 = vrot.slane %v286, 2
    %v290 = vmul.f32 %v276, %v288
    %v292 = vrot.slane %v290, 6
    %v294 = vadd.f32 %v285, %v292
    %s295 = scalar_lea.vmem [#allocation4], 48
    %v296 = vld [vmem:[%s295] sm:$0xff]
    %v297 = vlaneseq
    %v298 = vshrl.u32 %v297, 7
    %v299 = vsub.s32 4, %v298
    %v300 = vrot.slane %v294, %v299
    %v301 = vlaneseq
    %v302 = vshrl.u32 %v301, 7
    %v303 = vsub.s32 5, %v302
    %v304 = vrot.slane %v294, %v303
    %v305 = vmul.f32 %v65, %v300
    %v306 = vmul.f32 %v67, %v304
    %v307 = vadd.f32 %v305, %v306
    %v308 = vadd.f32 %v307, %v69
    %v309 = vadd.f32 %v296, %v308
    %v310 = vmul.f32 %v309, 0.5
    %v311 = vtanh.pop %v310
    %v312 = vmul.f32 %v311, 0.5
    %v313 = vadd.f32 %v312, 0.5
    %v315 = vrot.slane %v308, 4
    %v317 = vmul.f32 %v313, %v315
    %v319 = vrot.slane %v317, 4
    %v321 = vadd.f32 %v296, %v319
    %v322 = vtanh.pop %v321
    %v323 = vsub.f32 %v294, %v322
    %v325 = vrot.slane %v323, 2
    %v327 = vmul.f32 %v313, %v325
    %v329 = vrot.slane %v327, 6
    %v331 = vadd.f32 %v322, %v329
    %s332 = scalar_lea.vmem [#allocation4], 56
    %v333 = vld [vmem:[%s332] sm:$0xff]
    %v334 = vlaneseq
    %v335 = vshrl.u32 %v334, 7
    %v336 = vsub.s32 4, %v335
    %v337 = vrot.slane %v331, %v336
    %v338 = vlaneseq
    %v339 = vshrl.u32 %v338, 7
    %v340 = vsub.s32 5, %v339
    %v341 = vrot.slane %v331, %v340
    %v342 = vmul.f32 %v65, %v337
    %v343 = vmul.f32 %v67, %v341
    %v344 = vadd.f32 %v342, %v343
    %v345 = vadd.f32 %v344, %v69
    %v346 = vadd.f32 %v333, %v345
    %v347 = vmul.f32 %v346, 0.5
    %v348 = vtanh.pop %v347
    %v349 = vmul.f32 %v348, 0.5
    %v350 = vadd.f32 %v349, 0.5
    %v352 = vrot.slane %v345, 4
    %v354 = vmul.f32 %v350, %v352
    %v356 = vrot.slane %v354, 4
    %v358 = vadd.f32 %v333, %v356
    %v359 = vtanh.pop %v358
    %v360 = vsub.f32 %v331, %v359
    %v362 = vrot.slane %v360, 2
    %v364 = vmul.f32 %v350, %v362
    %v366 = vrot.slane %v364, 6
    %v368 = vadd.f32 %v359, %v366
    %369 = vst [vmem:[#allocation2 - $0x4] sm:$0x30] %v368
    // Predicated region
    $region34: #{tpu_custom_call.1} parent=1 // pred_check
      %p370 = pneg %p60
    $region35: #{tpu_custom_call.1} parent=1 // pred_check_branch
      %372 = sbr.rel (%p370) target = $region37
    $region36: #{tpu_custom_call.1} parent=1 // pred_region
      %s373 = sld [smem:[#allocation10]]
      %v374 = vstv %s373
      %v375 = vmul.f32 %v374, %v368
      %s376 = sld [smem:[#allocation10 + $0x1]]
      %v377 = vstv %s376
      %v378 = vmul.f32 %v377, %v368
      %v380 = vrot.slane %v378, 1
      %v382 = vadd.f32 %v375, %v380
      %s383 = sld [smem:[#allocation3]]
      %v384 = vstv %s383
      %v385 = vadd.f32 %v382, %v384
      %v386 = vmul.f32 %v385, 0.5
      %v387 = vtanh.pop %v386
      %v388 = vmul.f32 %v387, 0.5
      %v389 = vadd.f32 %v388, 0.5
      %390 = vst [vmem:[#allocation11 - $0x4] sm:$0x10] %v389
    $region37: #{tpu_custom_call.1} parent=1 // pred_fallthru
      _
    // Predicated region
    $region38: #{tpu_custom_call.1} parent=1 // pred_check
      _
    $region39: #{tpu_custom_call.1} parent=1 // pred_check_branch
      %392 = sbr.rel (0) target = $region41
    $region40: #{tpu_custom_call.1} parent=1 // pred_region
      %s394 = ssub.s32 16, 16
      %395 = vsyncadd [#allocation6], %s394
      %s397 = sshll.u32 [#allocation11], 4
      %s398 = int_to_ptr.vmem [resolvable:$true] %s397
      %400 = dma.vmem_to_hbm [thread:$0]  %s398, 16, %s4, [#allocation6]
    $region41: #{tpu_custom_call.1} parent=1 // pred_fallthru
      _
    // Predicated region
    $region42: #{tpu_custom_call.1} parent=1 // pred_check
      _
    $region43: #{tpu_custom_call.1} parent=1 // pred_check_branch
      %402 = sbr.rel (0) target = $region45
    $region44: #{tpu_custom_call.1} parent=1 // pred_region
      %403 = dma.done [#allocation6], 16
    $region45: #{tpu_custom_call.1} parent=1 // pred_fallthru
      _
    %404 = vsyncpa [#allocation5], 1
    %405 = vsyncpa [#allocation9], 1
    %406 = vsyncpa [#allocation6], 1
    %407 = vsyncpa [#allocation7], 1

</llo_original>
